<compile_context>
chip_gen: v5e
topology: v5e:2x2
jax: 0.10.0
libtpu: 0.0.40
codegen_flags: <defaults>
</compile_context>

<pallas_src>
import math

import jax
import jax.numpy as jnp
from jax.experimental import pallas as pl
from jax.experimental.pallas import tpu as pltpu

LN_EPS = 1e-5


def _patch_merge_kernel(xe_ref, xo_ref, we_ref, wo_ref, b_ref, o_ref):
    """Fused 2x2-merge LayerNorm + reduction matmul on a tile of tokens.

    xe_ref: (t_r, Wh, 2C)  even input rows -> per-token [x0 | x2] features
    xo_ref: (t_r, Wh, 2C)  odd  input rows -> per-token [x1 | x3] features
    we_ref: (2C, Nout)     gamma-folded weight rows for the even half (bf16)
    wo_ref: (2C, Nout)     gamma-folded weight rows for the odd half  (bf16)
    b_ref:  (1, Nout)      beta @ W^T (f32)
    o_ref:  (t_r*Wh, Nout) output tokens
    """
    t_r, wh, ch = xe_ref.shape
    tm = t_r * wh

    # LN statistics in f32 on the VPU (v5e has no bf16 VPU).
    xe = xe_ref[...].astype(jnp.float32).reshape(tm, ch)
    xo = xo_ref[...].astype(jnp.float32).reshape(tm, ch)

    inv_n = 1.0 / float(2 * ch)  # 1 / (4*C)
    mean = (jnp.sum(xe, axis=-1, keepdims=True)
            + jnp.sum(xo, axis=-1, keepdims=True)) * inv_n
    de = xe - mean
    do = xo - mean
    var = (jnp.sum(de * de, axis=-1, keepdims=True)
           + jnp.sum(do * do, axis=-1, keepdims=True)) * inv_n
    rstd = jax.lax.rsqrt(var + LN_EPS)

    # bf16 MXU matmuls with f32 accumulation; gamma is folded into the weight.
    acc = jnp.dot(de.astype(we_ref.dtype), we_ref[...],
                  preferred_element_type=jnp.float32)
    acc = acc + jnp.dot(do.astype(wo_ref.dtype), wo_ref[...],
                        preferred_element_type=jnp.float32)

    out = acc * rstd + b_ref[...]
    o_ref[...] = out.astype(o_ref.dtype)


def patch_merging_forward(x, weight, gamma, beta, input_resolution_patches):
    """PatchMerging forward.

    x:      (B, L, C)
    weight: (2C, 4C)  nn.Linear weight (out_features, in_features), no bias
    gamma:  (4C,)     LayerNorm weight
    beta:   (4C,)     LayerNorm bias
    returns (B, (H//2)*(W//2), 2C)
    """
    B, L, C = x.shape
    H, W = input_resolution_patches
    if L != H * W:
        s = math.isqrt(L)
        if s * s == L:
            H = W = s
        else:
            raise ValueError(
                f"PatchMerging L={L} != H*W={H * W} and L is not a perfect square")

    Hh, Wh = H // 2, W // 2
    if Hh == 0 or Wh == 0:
        raise ValueError("PatchMerging requires H >= 2 and W >= 2")

    xv = x.reshape(B, H, W, C)
    if (H != 2 * Hh) or (W != 2 * Wh):
        # PyTorch code truncates odd trailing rows/cols via the //2*2 slices.
        xv = xv[:, : 2 * Hh, : 2 * Wh, :]

    R = B * Hh              # number of row-pairs
    M = R * Wh              # number of output tokens
    Ch = 2 * C              # features per fused half
    C2 = 2 * C              # output features

    # Free reshape: (B, 2Hh, 2Wh, C) -> (R, 2, Wh, 2C).
    # Along the size-2 axis, index 0 holds per-token [x0|x2], index 1 [x1|x3].
    x5 = xv.reshape(R, 2, Wh, Ch)

    # ---- fold LayerNorm affine + feature permutation into the weight -------
    # Fused feature order is [x0, x2, x1, x3]; LN mean/var are permutation
    # invariant, so permuting gamma/beta/W rows keeps the op exact.
    perm = jnp.concatenate([
        jnp.arange(0, C), jnp.arange(2 * C, 3 * C),
        jnp.arange(C, 2 * C), jnp.arange(3 * C, 4 * C)])
    w_t = weight.astype(jnp.float32).T                      # (4C, 2C)
    wg = (gamma.astype(jnp.float32)[:, None] * w_t)[perm]   # (4C, 2C), permuted rows
    bias = (beta.astype(jnp.float32) @ w_t).reshape(1, C2)  # (1, 2C)

    # Lane-dense output: pad N up to 128 when 2C < 128 (tiny-C configs).
    n_out = C2 if C2 >= 128 else 128
    if n_out != C2:
        wg = jnp.pad(wg, ((0, 0), (0, n_out - C2)))
        bias = jnp.pad(bias, ((0, 0), (0, n_out - C2)))

    wg_e = wg[:Ch].astype(jnp.bfloat16)   # rows for [x0 | x2]
    wg_o = wg[Ch:].astype(jnp.bfloat16)   # rows for [x1 | x3]

    # ---- tiling along the token axis ---------------------------------------
    x_bytes = x.dtype.itemsize
    t_r = max(1, -(-512 // Wh))                    # ~512 tokens per grid step
    if R >= 2:
        t_r = min(t_r, -(-R // 2))                 # >= 2 steps -> both v7x TCs
    # Keep double-buffered inputs/outputs + weights under ~20 MiB of VMEM
    # (safe w.r.t. the 32 MiB default scoped limit, incl. v7x).
    weight_bytes = 2 * (Ch * n_out * 2) * 2 + n_out * 4 * 2
    per_r = Wh * (2 * Ch * x_bytes + n_out * 4)
    cap = max(1, (20 * 1024 * 1024 - weight_bytes) // (2 * per_r))
    t_r = max(1, min(t_r, cap))
    # Keep the token tile sublane-aligned: (t_r * Wh) % 8 == 0.
    step = 8 // math.gcd(Wh, 8)
    t_r = -(-t_r // step) * step
    if t_r >= R:
        t_r = R       # single full-extent block along tokens (always legal)
    tm = t_r * Wh
    grid = (pl.cdiv(R, t_r),)

    out_flat = pl.pallas_call(
        _patch_merge_kernel,
        out_shape=jax.ShapeDtypeStruct((M, n_out), x.dtype),
        grid_spec=pltpu.PrefetchScalarGridSpec(
            num_scalar_prefetch=0,
            grid=grid,
            in_specs=[
                # even rows of each 2x2 pair -> [x0 | x2] per token
                pl.BlockSpec((t_r, None, Wh, Ch), lambda i: (i, 0, 0, 0)),
                # odd rows of each 2x2 pair  -> [x1 | x3] per token
                pl.BlockSpec((t_r, None, Wh, Ch), lambda i: (i, 1, 0, 0)),
                pl.BlockSpec((Ch, n_out), lambda i: (0, 0)),
                pl.BlockSpec((Ch, n_out), lambda i: (0, 0)),
                pl.BlockSpec((1, n_out), lambda i: (0, 0)),
            ],
            out_specs=pl.BlockSpec((tm, n_out), lambda i: (i, 0)),
        ),
        compiler_params=pltpu.CompilerParams(
            dimension_semantics=("parallel",)),
    )(x5, x5, wg_e, wg_o, bias)

    out = out_flat[:, :C2]          # drop lane padding (no-op when 2C >= 128)
    return out.reshape(B, Hh * Wh, C2)


def _reference_forward(x, weight, gamma, beta, input_resolution_patches):
    """Pure-JAX f32 reference mirroring the PyTorch module."""
    B, L, C = x.shape
    H, W = input_resolution_patches
    if L != H * W:
        s = math.isqrt(L)
        H = W = s
    xv = x.reshape(B, H, W, C)
    H2, W2 = (H // 2) * 2, (W // 2) * 2
    x0 = xv[:, 0:H2:2, 0:W2:2, :]
    x1 = xv[:, 1:H2:2, 0:W2:2, :]
    x2 = xv[:, 0:H2:2, 1:W2:2, :]
    x3 = xv[:, 1:H2:2, 1:W2:2, :]
    xc = jnp.concatenate([x0, x1, x2, x3], axis=-1).reshape(B, -1, 4 * C)
    mean = jnp.mean(xc, axis=-1, keepdims=True)
    var = jnp.mean((xc - mean) ** 2, axis=-1, keepdims=True)
    xn = (xc - mean) / jnp.sqrt(var + LN_EPS) * gamma + beta
    return xn @ weight.T


if __name__ == "__main__":
    # Module config: input_resolution_patches=(16, 16), dim=4
    B, C = 2, 4
    H = W = 16
    L = H * W

    key = jax.random.PRNGKey(0)
    kx, kw = jax.random.split(key)
    x = jax.random.normal(kx, (B, L, C), dtype=jnp.float32)

    # Parameters (shapes from __init__): reduction (2C, 4C) no bias; norm (4C,).
    weight = jax.random.normal(kw, (2 * C, 4 * C), dtype=jnp.float32) * 0.05
    gamma = 1.0 + 0.1 * jnp.cos(jnp.arange(4 * C, dtype=jnp.float32))
    beta = 0.05 * jnp.sin(jnp.arange(4 * C, dtype=jnp.float32))

    out = patch_merging_forward(x, weight, gamma, beta, (H, W))
    out = jax.block_until_ready(out)

    ref = _reference_forward(x, weight, gamma, beta, (H, W))
    assert out.shape == (B, (H // 2) * (W // 2), 2 * C)
    # bf16 MXU operands (f32 LN stats + f32 accumulation) -> slightly looser
    # tolerance than the pure-f32 reference.
    max_err = float(jnp.max(jnp.abs(out - ref)))
    assert jnp.allclose(out, ref, atol=3e-2, rtol=3e-2), max_err

    print("KERNEL_OK")
</pallas_src>

<mosaic_0001>
module attributes {stable_mosaic.version = 11 : i64} {
  func.func @_patch_merge_kernel(%arg0: i32, %arg1: memref<8x1x8x8xf32, #tpu.memory_space<vmem>>, %arg2: memref<8x1x8x8xf32, #tpu.memory_space<vmem>>, %arg3: memref<8x128xbf16, #tpu.memory_space<vmem>>, %arg4: memref<8x128xbf16, #tpu.memory_space<vmem>>, %arg5: memref<1x128xf32, #tpu.memory_space<vmem>>, %arg6: memref<64x128xf32, #tpu.memory_space<vmem>>) attributes {dimension_semantics = [#tpu.dimension_semantics<parallel>], iteration_bounds = array<i64: 2>, scalar_prefetch = 0 : i64, scratch_operands = 0 : i64, tpu.core_type = #tpu.core_type<tc>, window_params = [{transform_indices = @transform_0, window_bounds = array<i64: 8, 1, 8, 8>}, {transform_indices = @transform_1, window_bounds = array<i64: 8, 1, 8, 8>}, {pipeline_mode = #tpu.pipeline_mode<synchronous>, transform_indices = @transform_2, window_bounds = array<i64: 8, 128>}, {pipeline_mode = #tpu.pipeline_mode<synchronous>, transform_indices = @transform_3, window_bounds = array<i64: 8, 128>}, {pipeline_mode = #tpu.pipeline_mode<synchronous>, transform_indices = @transform_4, window_bounds = array<i64: 1, 128>}, {transform_indices = @transform_5, window_bounds = array<i64: 64, 128>}]} {
    %c0 = arith.constant 0 : index
    %c0_0 = arith.constant 0 : index
    %c0_1 = arith.constant 0 : index
    %c0_2 = arith.constant 0 : index
    %0 = vector.load %arg1[%c0, %c0_0, %c0_1, %c0_2] : memref<8x1x8x8xf32, #tpu.memory_space<vmem>>, vector<8x1x8x8xf32>
    %1 = vector.shape_cast %0 : vector<8x1x8x8xf32> to vector<8x8x8xf32>
    %2 = vector.shape_cast %1 : vector<8x8x8xf32> to vector<64x8xf32>
    %c0_3 = arith.constant 0 : index
    %c0_4 = arith.constant 0 : index
    %c0_5 = arith.constant 0 : index
    %c0_6 = arith.constant 0 : index
    %3 = vector.load %arg2[%c0_3, %c0_4, %c0_5, %c0_6] : memref<8x1x8x8xf32, #tpu.memory_space<vmem>>, vector<8x1x8x8xf32>
    %4 = vector.shape_cast %3 : vector<8x1x8x8xf32> to vector<8x8x8xf32>
    %5 = vector.shape_cast %4 : vector<8x8x8xf32> to vector<64x8xf32>
    %cst = arith.constant dense<0.000000e+00> : vector<64xf32>
    %6 = vector.multi_reduction <add>, %2, %cst [1] : vector<64x8xf32> to vector<64xf32>
    %7 = vector.shape_cast %6 : vector<64xf32> to vector<64x1xf32>
    %cst_7 = arith.constant dense<0.000000e+00> : vector<64xf32>
    %8 = vector.multi_reduction <add>, %5, %cst_7 [1] : vector<64x8xf32> to vector<64xf32>
    %9 = vector.shape_cast %8 : vector<64xf32> to vector<64x1xf32>
    %10 = arith.addf %7, %9 : vector<64x1xf32>
    %cst_8 = arith.constant 6.250000e-02 : f32
    %11 = vector.broadcast %cst_8 : f32 to vector<64x1xf32>
    %12 = arith.mulf %10, %11 : vector<64x1xf32>
    %13 = vector.broadcast %12 : vector<64x1xf32> to vector<64x8xf32>
    %14 = arith.subf %2, %13 : vector<64x8xf32>
    %15 = vector.broadcast %12 : vector<64x1xf32> to vector<64x8xf32>
    %16 = arith.subf %5, %15 : vector<64x8xf32>
    %17 = arith.mulf %14, %14 : vector<64x8xf32>
    %cst_9 = arith.constant dense<0.000000e+00> : vector<64xf32>
    %18 = vector.multi_reduction <add>, %17, %cst_9 [1] : vector<64x8xf32> to vector<64xf32>
    %19 = vector.shape_cast %18 : vector<64xf32> to vector<64x1xf32>
    %20 = arith.mulf %16, %16 : vector<64x8xf32>
    %cst_10 = arith.constant dense<0.000000e+00> : vector<64xf32>
    %21 = vector.multi_reduction <add>, %20, %cst_10 [1] : vector<64x8xf32> to vector<64xf32>
    %22 = vector.shape_cast %21 : vector<64xf32> to vector<64x1xf32>
    %23 = arith.addf %19, %22 : vector<64x1xf32>
    %cst_11 = arith.constant 6.250000e-02 : f32
    %24 = vector.broadcast %cst_11 : f32 to vector<64x1xf32>
    %25 = arith.mulf %23, %24 : vector<64x1xf32>
    %cst_12 = arith.constant 9.99999974E-6 : f32
    %26 = vector.broadcast %cst_12 : f32 to vector<64x1xf32>
    %27 = arith.addf %25, %26 : vector<64x1xf32>
    %28 = math.rsqrt %27 : vector<64x1xf32>
    %29 = arith.truncf %14 : vector<64x8xf32> to vector<64x8xbf16>
    %c0_13 = arith.constant 0 : index
    %c0_14 = arith.constant 0 : index
    %30 = vector.load %arg3[%c0_13, %c0_14] : memref<8x128xbf16, #tpu.memory_space<vmem>>, vector<8x128xbf16>
    %cst_15 = arith.constant dense<0.000000e+00> : vector<64x128xf32>
    %31 = tpu.matmul %29, %30, %cst_15 {dimension_numbers = #tpu.dot_dimension_numbers<[1], [0], [0], [1], [0, 0, 1, 1], [], []>} : vector<64x8xbf16>, vector<8x128xbf16>, vector<64x128xf32> -> vector<64x128xf32>
    %32 = arith.truncf %16 : vector<64x8xf32> to vector<64x8xbf16>
    %c0_16 = arith.constant 0 : index
    %c0_17 = arith.constant 0 : index
    %33 = vector.load %arg4[%c0_16, %c0_17] : memref<8x128xbf16, #tpu.memory_space<vmem>>, vector<8x128xbf16>
    %cst_18 = arith.constant dense<0.000000e+00> : vector<64x128xf32>
    %34 = tpu.matmul %32, %33, %cst_18 {dimension_numbers = #tpu.dot_dimension_numbers<[1], [0], [0], [1], [0, 0, 1, 1], [], []>} : vector<64x8xbf16>, vector<8x128xbf16>, vector<64x128xf32> -> vector<64x128xf32>
    %35 = arith.addf %31, %34 : vector<64x128xf32>
    %36 = vector.broadcast %28 : vector<64x1xf32> to vector<64x128xf32>
    %37 = arith.mulf %35, %36 : vector<64x128xf32>
    %c0_19 = arith.constant 0 : index
    %c0_20 = arith.constant 0 : index
    %38 = vector.load %arg5[%c0_19, %c0_20] : memref<1x128xf32, #tpu.memory_space<vmem>>, vector<1x128xf32>
    %39 = vector.broadcast %38 : vector<1x128xf32> to vector<64x128xf32>
    %40 = arith.addf %37, %39 : vector<64x128xf32>
    %c0_21 = arith.constant 0 : index
    %c0_22 = arith.constant 0 : index
    %41 = vector.load %arg6[%c0_21, %c0_22] : memref<64x128xf32, #tpu.memory_space<vmem>>, vector<64x128xf32>
    tpu.vector_store %arg6[%c0_21, %c0_22], %40 {strides = array<i32>} : memref<64x128xf32, #tpu.memory_space<vmem>>, vector<64x128xf32>,
    return
  }
  func.func @transform_0(%arg0: i32) -> (i32, i32, i32, i32) {
    %c0_i32 = arith.constant 0 : i32
    %c0_i32_0 = arith.constant 0 : i32
    %c0_i32_1 = arith.constant 0 : i32
    %c0_i32_2 = arith.constant 0 : i32
    return %arg0, %c0_i32, %c0_i32_0, %c0_i32_1 : i32, i32, i32, i32
  }
  func.func @transform_1(%arg0: i32) -> (i32, i32, i32, i32) {
    %c1_i32 = arith.constant 1 : i32
    %c0_i32 = arith.constant 0 : i32
    %c0_i32_0 = arith.constant 0 : i32
    %c0_i32_1 = arith.constant 0 : i32
    return %arg0, %c1_i32, %c0_i32, %c0_i32_0 : i32, i32, i32, i32
  }
  func.func @transform_2(%arg0: i32) -> (i32, i32) {
    %c0_i32 = arith.constant 0 : i32
    %c0_i32_0 = arith.constant 0 : i32
    %c0_i32_1 = arith.constant 0 : i32
    return %c0_i32, %c0_i32_0 : i32, i32
  }
  func.func @transform_3(%arg0: i32) -> (i32, i32) {
    %c0_i32 = arith.constant 0 : i32
    %c0_i32_0 = arith.constant 0 : i32
    %c0_i32_1 = arith.constant 0 : i32
    return %c0_i32, %c0_i32_0 : i32, i32
  }
  func.func @transform_4(%arg0: i32) -> (i32, i32) {
    %c0_i32 = arith.constant 0 : i32
    %c0_i32_0 = arith.constant 0 : i32
    %c0_i32_1 = arith.constant 0 : i32
    return %c0_i32, %c0_i32_0 : i32, i32
  }
  func.func @transform_5(%arg0: i32) -> (i32, i32) {
    %c0_i32 = arith.constant 0 : i32
    %c0_i32_0 = arith.constant 0 : i32
    return %arg0, %c0_i32 : i32, i32
  }
}

</mosaic_0001>

<llo_original>
// kernel: tpu_custom_call.1
$region0: #{tpu_custom_call.1}
  #allocation0 [shape = 'u32[]', space=smem, size = 0x4, offset = 0x4, fixed_abs, tag = 'smem constant byte address 0x4 - core index']
  #allocation1 [shape = 'u32[72,128]{1,0:T(1,128)}', space=vmem, size = 0x9000, scoped, tag = 'internal scratch']
  %s0 = inlined_call_operand.vmem [shape: f32[16,2,8,8], index: 0, kind: input, shape index: {}]
  %s1 = inlined_call_operand.vmem [shape: f32[16,2,8,8], index: 1, kind: input, shape index: {}]
  %s2 = inlined_call_operand.vmem [shape: bf16[8,128], index: 2, kind: input, shape index: {}]
  %s3 = inlined_call_operand.vmem [shape: bf16[8,128], index: 3, kind: input, shape index: {}]
  %s4 = inlined_call_operand.vmem [shape: f32[1,128], index: 4, kind: input, shape index: {}]
  %s5 = inlined_call_operand.hbm [shape: f32[128,128], index: 5, kind: output, shape index: {}]
  %s6 = sld [smem:[#allocation0]]
  $region129: #{tpu_custom_call.1} parent=0
    _
  %s8 = ssub.s32 1, %s6
  %s9 = scalar_select 0, %s8, %s6
  $region1: #{tpu_custom_call.1} parent=0
    #allocation2 [shape = 'u8[65536]{0}', space=vmem, size = 0x10000, scoped, tag = 'input window, operand 0']
    #allocation3 [shape = 'u8[65536]{0}', space=vmem, size = 0x10000, scoped, tag = 'input window, operand 1']
    #allocation4 [shape = 'u8[65536]{0}', space=vmem, size = 0x10000, scoped, tag = 'output window, operand 0']
    #allocation5 [shape = 's32[2]{0}', space=sflag, size = 0x8, scoped, tag = 'scoped memory for tpu_custom_call.1']
    %10 = vsyncpa [#allocation5], 0
    %s11 = scalar_lea.sflag [#allocation5], 1
    %12 = vsyncpa %s11, 0
    loop: start=0, step=1, limit=4
    $region2: #{tpu_custom_call.1} parent=1 // loop_pre_header
      _
    $region3: #{tpu_custom_call.1} parent=1 // loop_header
      %s14 = sphi 0, %s18
      %p15 = scmp.ge.s32.totalorder %s14, 4
      %s24 = sphi 0, %s26
      %s27 = sphi 0, %s24
      %s28 = sphi 0, %s27
      %s44 = sphi 0, %s28
      %s50 = sphi 0, %s52
      %s53 = sphi 0, %s50
      %s54 = sphi 0, %s53
      %s70 = sphi 0, %s54
      %s74 = sphi 0, %s74
      %s76 = sphi 0, %s74
      %s77 = sphi 0, %s76
      %s91 = sphi 0, %s77
      %s95 = sphi 0, %s95
      %s97 = sphi 0, %s95
      %s98 = sphi 0, %s97
      %s112 = sphi 0, %s98
      %s116 = sphi 0, %s116
      %s118 = sphi 0, %s116
      %s119 = sphi 0, %s118
      %s133 = sphi 0, %s119
      %s139 = sphi 0, %s141
      %s142 = sphi 0, %s139
      %s143 = sphi 0, %s142
      %s159 = sphi 0, %s143
    $region4: #{tpu_custom_call.1} parent=1 // loop_header_branch
      %17 = sbr.rel (%p15) target = $region8
    $region5: #{tpu_custom_call.1} parent=1 // loop_body
      %s19 = ssub.s32 %s14, 1
      %s20 = ssub.s32 %s14, 2
      %s21 = sadd.s32 %s14, 1
      %s22 = ssub.s32 %s14, %s21
      %p23 = scmp.eq.s32.totalorder %s22, 0
      %s25 = sadd.s32 %s24, 1
      %s26 = scalar_select %p23, %s24, %s25
      %p29 = pneg %p23
      %p30 = scmp.eq.s32.totalorder %s14, 1
      %p31 = por %p29, %p30
      %p32 = scmp.ne.s32.totalorder %s24, %s27
      %p33 = scmp.eq.s32.totalorder %s14, 0
      %p34 = por %p32, %p33
      %p35 = scmp.ne.s32.totalorder %s24, %s27
      %p36 = scmp.eq.s32.totalorder %s19, 1
      %p37 = por %p35, %p36
      %p38 = scmp.ne.s32.totalorder %s27, %s28
      %p39 = scmp.eq.s32.totalorder %s19, 0
      %p40 = por %p38, %p39
      %p41 = scmp.ne.s32.totalorder %s27, %s28
      %p42 = scmp.eq.s32.totalorder %s20, 1
      %p43 = por %p41, %p42
      %p45 = scmp.ne.s32.totalorder %s28, %s44
      %p46 = scmp.eq.s32.totalorder %s20, 0
      %p47 = por %p45, %p46
      %s48 = ssub.s32 %s14, %s21
      %p49 = scmp.eq.s32.totalorder %s48, 0
      %s51 = sadd.s32 %s50, 1
      %s52 = scalar_select %p49, %s50, %s51
      %p55 = pneg %p49
      %p56 = scmp.eq.s32.totalorder %s14, 1
      %p57 = por %p55, %p56
      %p58 = scmp.ne.s32.totalorder %s50, %s53
      %p59 = scmp.eq.s32.totalorder %s14, 0
      %p60 = por %p58, %p59
      %p61 = scmp.ne.s32.totalorder %s50, %s53
      %p62 = scmp.eq.s32.totalorder %s19, 1
      %p63 = por %p61, %p62
      %p64 = scmp.ne.s32.totalorder %s53, %s54
      %p65 = scmp.eq.s32.totalorder %s19, 0
      %p66 = por %p64, %p65
      %p67 = scmp.ne.s32.totalorder %s53, %s54
      %p68 = scmp.eq.s32.totalorder %s20, 1
      %p69 = por %p67, %p68
      %p71 = scmp.ne.s32.totalorder %s54, %s70
      %p72 = scmp.eq.s32.totalorder %s20, 0
      %p73 = por %p71, %p72
      %s75 = sadd.s32 %s74, 1
      %p78 = scmp.eq.s32.totalorder %s14, 1
      %p79 = scmp.ne.s32.totalorder %s74, %s76
      %p80 = scmp.eq.s32.totalorder %s14, 0
      %p81 = por %p79, %p80
      %p82 = scmp.ne.s32.totalorder %s74, %s76
      %p83 = scmp.eq.s32.totalorder %s19, 1
      %p84 = por %p82, %p83
      %p85 = scmp.ne.s32.totalorder %s76, %s77
      %p86 = scmp.eq.s32.totalorder %s19, 0
      %p87 = por %p85, %p86
      %p88 = scmp.ne.s32.totalorder %s76, %s77
      %p89 = scmp.eq.s32.totalorder %s20, 1
      %p90 = por %p88, %p89
      %p92 = scmp.ne.s32.totalorder %s77, %s91
      %p93 = scmp.eq.s32.totalorder %s20, 0
      %p94 = por %p92, %p93
      %s96 = sadd.s32 %s95, 1
      %p99 = scmp.eq.s32.totalorder %s14, 1
      %p100 = scmp.ne.s32.totalorder %s95, %s97
      %p101 = scmp.eq.s32.totalorder %s14, 0
      %p102 = por %p100, %p101
      %p103 = scmp.ne.s32.totalorder %s95, %s97
      %p104 = scmp.eq.s32.totalorder %s19, 1
      %p105 = por %p103, %p104
      %p106 = scmp.ne.s32.totalorder %s97, %s98
      %p107 = scmp.eq.s32.totalorder %s19, 0
      %p108 = por %p106, %p107
      %p109 = scmp.ne.s32.totalorder %s97, %s98
      %p110 = scmp.eq.s32.totalorder %s20, 1
      %p111 = por %p109, %p110
      %p113 = scmp.ne.s32.totalorder %s98, %s112
      %p114 = scmp.eq.s32.totalorder %s20, 0
      %p115 = por %p113, %p114
      %s117 = sadd.s32 %s116, 1
      %p120 = scmp.eq.s32.totalorder %s14, 1
      %p121 = scmp.ne.s32.totalorder %s116, %s118
      %p122 = scmp.eq.s32.totalorder %s14, 0
      %p123 = por %p121, %p122
      %p124 = scmp.ne.s32.totalorder %s116, %s118
      %p125 = scmp.eq.s32.totalorder %s19, 1
      %p126 = por %p124, %p125
      %p127 = scmp.ne.s32.totalorder %s118, %s119
      %p128 = scmp.eq.s32.totalorder %s19, 0
      %p129 = por %p127, %p128
      %p130 = scmp.ne.s32.totalorder %s118, %s119
      %p131 = scmp.eq.s32.totalorder %s20, 1
      %p132 = por %p130, %p131
      %p134 = scmp.ne.s32.totalorder %s119, %s133
      %p135 = scmp.eq.s32.totalorder %s20, 0
      %p136 = por %p134, %p135
      %s137 = ssub.s32 %s14, %s21
      %p138 = scmp.eq.s32.totalorder %s137, 0
      %s140 = sadd.s32 %s139, 1
      %s141 = scalar_select %p138, %s139, %s140
      %p144 = pneg %p138
      %p145 = scmp.eq.s32.totalorder %s14, 1
      %p146 = por %p144, %p145
      %p147 = scmp.ne.s32.totalorder %s139, %s142
      %p148 = scmp.eq.s32.totalorder %s14, 0
      %p149 = por %p147, %p148
      %p150 = scmp.ne.s32.totalorder %s139, %s142
      %p151 = scmp.eq.s32.totalorder %s19, 1
      %p152 = por %p150, %p151
      %p153 = scmp.ne.s32.totalorder %s142, %s143
      %p154 = scmp.eq.s32.totalorder %s19, 0
      %p155 = por %p153, %p154
      %p156 = scmp.ne.s32.totalorder %s142, %s143
      %p157 = scmp.eq.s32.totalorder %s20, 1
      %p158 = por %p156, %p157
      %p160 = scmp.ne.s32.totalorder %s143, %s159
      %p161 = scmp.eq.s32.totalorder %s20, 0
      %p162 = por %p160, %p161
      %p163 = scmp.le.s32.totalorder 1, %s14
      %p164 = scmp.lt.s32.totalorder %s14, 3
      %p165 = pnand %p163, %p164
      %p166 = pneg %p165
      // Predicated region
      $region9: #{tpu_custom_call.1} parent=5 // pred_check
        _
      $region10: #{tpu_custom_call.1} parent=5 // pred_check_branch
        %168 = sbr.rel (%p165) target = $region12
      $region11: #{tpu_custom_call.1} parent=5 // pred_region
        %s169 = ssub.s32 %s14, 1
        // Predicated region
        $region13: #{tpu_custom_call.1} parent=11 // pred_check
          %p170 = pneg %p87
        $region14: #{tpu_custom_call.1} parent=11 // pred_check_branch
          %172 = sbr.rel (%p170) target = $region16
        $region15: #{tpu_custom_call.1} parent=11 // pred_region
          _
        $region16: #{tpu_custom_call.1} parent=11 // pred_fallthru
          _
        // Predicated region
        $region17: #{tpu_custom_call.1} parent=11 // pred_check
          %p173 = pneg %p108
        $region18: #{tpu_custom_call.1} parent=11 // pred_check_branch
          %175 = sbr.rel (%p173) target = $region20
        $region19: #{tpu_custom_call.1} parent=11 // pred_region
          _
        $region20: #{tpu_custom_call.1} parent=11 // pred_fallthru
          _
        // Predicated region
        $region21: #{tpu_custom_call.1} parent=11 // pred_check
          %p176 = pneg %p129
        $region22: #{tpu_custom_call.1} parent=11 // pred_check_branch
          %178 = sbr.rel (%p176) target = $region24
        $region23: #{tpu_custom_call.1} parent=11 // pred_region
          _
        $region24: #{tpu_custom_call.1} parent=11 // pred_fallthru
          _
      $region12: #{tpu_custom_call.1} parent=5 // pred_fallthru
        _
      %p179 = scmp.lt.s32.totalorder %s14, 2
      // Predicated region
      $region25: #{tpu_custom_call.1} parent=5 // pred_check
        %p180 = pneg %p179
      $region26: #{tpu_custom_call.1} parent=5 // pred_check_branch
        %182 = sbr.rel (%p180) target = $region28
      $region27: #{tpu_custom_call.1} parent=5 // pred_region
        // Predicated region
        $region29: #{tpu_custom_call.1} parent=27 // pred_check
          %p183 = pneg %p34
        $region30: #{tpu_custom_call.1} parent=27 // pred_check_branch
          %185 = sbr.rel (%p183) target = $region32
        $region31: #{tpu_custom_call.1} parent=27 // pred_region
          %s186 = sand.u32 %s24, 1
          %s187 = sand.u32 %s24, 1
          %s188 = smul.addr %s187, 64
          %s189 = scalar_lea.vmem [#allocation2], %s188
          %s190 = smul.u32 8, %s14
          %s191 = smul.addr %s190, 2
          %s192 = smul.addr %s191, 8
          %s193 = scalar_lea.vmem %s0, %s192
          // Predicated region
          $region33: #{tpu_custom_call.1} parent=31 // pred_check
            _
          $region34: #{tpu_custom_call.1} parent=31 // pred_check_branch
            %195 = sbr.rel (0) target = $region36
          $region35: #{tpu_custom_call.1} parent=31 // pred_region
            // Predicated region
            $region37: #{tpu_custom_call.1} parent=35 // pred_check
              _
            $region38: #{tpu_custom_call.1} parent=35 // pred_check_branch
              %197 = sbr.rel (0) target = $region40
            $region39: #{tpu_custom_call.1} parent=35 // pred_region
              // Predicated region
              $region52: #{tpu_custom_call.1} parent=39 // pred_check
                _
              $region53: #{tpu_custom_call.1} parent=39 // pred_check_branch
                %227 = sbr.rel (0) target = $region55
              $region54: #{tpu_custom_call.1} parent=39 // pred_region
                loop: start=0, step=1, limit=1
                $region56: #{tpu_custom_call.1} parent=54 // loop_pre_header
                  _
                $region57: #{tpu_custom_call.1} parent=54 // loop_header
                  %s229 = sphi 0, %s233
                  %p230 = scmp.ge.s32.totalorder %s229, 1
                  %s234 = sphi %s193, %s193
                  %s235 = sphi %s189, %s189
                $region58: #{tpu_custom_call.1} parent=54 // loop_header_branch
                  %232 = sbr.rel (%p230) target = $region62
                $region59: #{tpu_custom_call.1} parent=54 // loop_body
                  %v236 = vld [vmem:[%s234] sm:$0xff]
                  %237 = vst [vmem:[%s235] sm:$0xff] %v236
                  %v238 = vld [vmem:[%s234 + $0x10] sm:$0xff]
                  %239 = vst [vmem:[%s235 + $0x8] sm:$0xff] %v238
                  %v240 = vld [vmem:[%s234 + $0x20] sm:$0xff]
                  %241 = vst [vmem:[%s235 + $0x10] sm:$0xff] %v240
                  %v242 = vld [vmem:[%s234 + $0x30] sm:$0xff]
                  %243 = vst [vmem:[%s235 + $0x18] sm:$0xff] %v242
                  %v244 = vld [vmem:[%s234 + $0x40] sm:$0xff]
                  %245 = vst [vmem:[%s235 + $0x20] sm:$0xff] %v244
                  %v246 = vld [vmem:[%s234 + $0x50] sm:$0xff]
                  %247 = vst [vmem:[%s235 + $0x28] sm:$0xff] %v246
                  %v248 = vld [vmem:[%s234 + $0x60] sm:$0xff]
                  %249 = vst [vmem:[%s235 + $0x30] sm:$0xff] %v248
                  %v250 = vld [vmem:[%s234 + $0x70] sm:$0xff]
                  %251 = vst [vmem:[%s235 + $0x38] sm:$0xff] %v250
                $region60: #{tpu_custom_call.1} parent=54 // loop_footer
                  %s233 = sadd.s32 1, %s229
                $region61: #{tpu_custom_call.1} parent=54 // loop_footer_branch
                  %228 = sbr.rel target = $region57
                $region62: #{tpu_custom_call.1} parent=54 // loop_exit
                  _
              $region55: #{tpu_custom_call.1} parent=39 // pred_fallthru
                _
              // Predicated region
              $region63: #{tpu_custom_call.1} parent=39 // pred_check
                _
              $region64: #{tpu_custom_call.1} parent=39 // pred_check_branch
                %253 = sbr.rel target = $region66
              $region65: #{tpu_custom_call.1} parent=39 // pred_region
                _
              $region66: #{tpu_custom_call.1} parent=39 // pred_fallthru
                _
            $region40: #{tpu_custom_call.1} parent=35 // pred_fallthru
              _
            // Predicated region
            $region41: #{tpu_custom_call.1} parent=35 // pred_check
              _
            $region42: #{tpu_custom_call.1} parent=35 // pred_check_branch
              %199 = sbr.rel target = $region44
            $region43: #{tpu_custom_call.1} parent=35 // pred_region
              %s201 = ssub.s32 256, 1
              loop: start=0, step=1, limit=1
              $region45: #{tpu_custom_call.1} parent=43 // loop_pre_header
                _
              $region46: #{tpu_custom_call.1} parent=43 // loop_header
                %s203 = sphi 0, %s207
                %p204 = scmp.ge.s32.totalorder %s203, 1
                %s208 = sphi %s193, %s193
                %s209 = sphi %s189, %s189
              $region47: #{tpu_custom_call.1} parent=43 // loop_header_branch
                %206 = sbr.rel (%p204) target = $region51
              $region48: #{tpu_custom_call.1} parent=43 // loop_body
                %v210 = vld [vmem:[%s208] sm:%s201]
                %211 = vst [vmem:[%s209] sm:%s201] %v210
                %v212 = vld [vmem:[%s208 + $0x10] sm:%s201]
                %213 = vst [vmem:[%s209 + $0x8] sm:%s201] %v212
                %v214 = vld [vmem:[%s208 + $0x20] sm:%s201]
                %215 = vst [vmem:[%s209 + $0x10] sm:%s201] %v214
                %v216 = vld [vmem:[%s208 + $0x30] sm:%s201]
                %217 = vst [vmem:[%s209 + $0x18] sm:%s201] %v216
                %v218 = vld [vmem:[%s208 + $0x40] sm:%s201]
                %219 = vst [vmem:[%s209 + $0x20] sm:%s201] %v218
                %v220 = vld [vmem:[%s208 + $0x50] sm:%s201]
                %221 = vst [vmem:[%s209 + $0x28] sm:%s201] %v220
                %v222 = vld [vmem:[%s208 + $0x60] sm:%s201]
                %223 = vst [vmem:[%s209 + $0x30] sm:%s201] %v222
                %v224 = vld [vmem:[%s208 + $0x70] sm:%s201]
                %225 = vst [vmem:[%s209 + $0x38] sm:%s201] %v224
              $region49: #{tpu_custom_call.1} parent=43 // loop_footer
                %s207 = sadd.s32 1, %s203
              $region50: #{tpu_custom_call.1} parent=43 // loop_footer_branch
                %202 = sbr.rel target = $region46
              $region51: #{tpu_custom_call.1} parent=43 // loop_exit
                _
            $region44: #{tpu_custom_call.1} parent=35 // pred_fallthru
              _
          $region36: #{tpu_custom_call.1} parent=31 // pred_fallthru
            _
          %254 = vnop
        $region32: #{tpu_custom_call.1} parent=27 // pred_fallthru
          _
        // Predicated region
        $region67: #{tpu_custom_call.1} parent=27 // pred_check
          %p255 = pneg %p60
        $region68: #{tpu_custom_call.1} parent=27 // pred_check_branch
          %257 = sbr.rel (%p255) target = $region70
        $region69: #{tpu_custom_call.1} parent=27 // pred_region
          %s258 = sand.u32 %s50, 1
          %s259 = sand.u32 %s50, 1
          %s260 = smul.addr %s259, 64
          %s261 = scalar_lea.vmem [#allocation3], %s260
          %s262 = smul.u32 8, %s14
          %s263 = smul.addr %s262, 2
          %s264 = sadd.s32 1, %s263
          %s265 = smul.addr %s264, 8
          %s266 = scalar_lea.vmem %s1, %s265
          // Predicated region
          $region71: #{tpu_custom_call.1} parent=69 // pred_check
            _
          $region72: #{tpu_custom_call.1} parent=69 // pred_check_branch
            %268 = sbr.rel (0) target = $region74
          $region73: #{tpu_custom_call.1} parent=69 // pred_region
            // Predicated region
            $region75: #{tpu_custom_call.1} parent=73 // pred_check
              _
            $region76: #{tpu_custom_call.1} parent=73 // pred_check_branch
              %270 = sbr.rel (0) target = $region78
            $region77: #{tpu_custom_call.1} parent=73 // pred_region
              // Predicated region
              $region90: #{tpu_custom_call.1} parent=77 // pred_check
                _
              $region91: #{tpu_custom_call.1} parent=77 // pred_check_branch
                %300 = sbr.rel (0) target = $region93
              $region92: #{tpu_custom_call.1} parent=77 // pred_region
                loop: start=0, step=1, limit=1
                $region94: #{tpu_custom_call.1} parent=92 // loop_pre_header
                  _
                $region95: #{tpu_custom_call.1} parent=92 // loop_header
                  %s302 = sphi 0, %s306
                  %p303 = scmp.ge.s32.totalorder %s302, 1
                  %s307 = sphi %s266, %s266
                  %s308 = sphi %s261, %s261
                $region96: #{tpu_custom_call.1} parent=92 // loop_header_branch
                  %305 = sbr.rel (%p303) target = $region100
                $region97: #{tpu_custom_call.1} parent=92 // loop_body
                  %v309 = vld [vmem:[%s307] sm:$0xff]
                  %310 = vst [vmem:[%s308] sm:$0xff] %v309
                  %v311 = vld [vmem:[%s307 + $0x10] sm:$0xff]
                  %312 = vst [vmem:[%s308 + $0x8] sm:$0xff] %v311
                  %v313 = vld [vmem:[%s307 + $0x20] sm:$0xff]
                  %314 = vst [vmem:[%s308 + $0x10] sm:$0xff] %v313
                  %v315 = vld [vmem:[%s307 + $0x30] sm:$0xff]
                  %316 = vst [vmem:[%s308 + $0x18] sm:$0xff] %v315
                  %v317 = vld [vmem:[%s307 + $0x40] sm:$0xff]
                  %318 = vst [vmem:[%s308 + $0x20] sm:$0xff] %v317
                  %v319 = vld [vmem:[%s307 + $0x50] sm:$0xff]
                  %320 = vst [vmem:[%s308 + $0x28] sm:$0xff] %v319
                  %v321 = vld [vmem:[%s307 + $0x60] sm:$0xff]
                  %322 = vst [vmem:[%s308 + $0x30] sm:$0xff] %v321
                  %v323 = vld [vmem:[%s307 + $0x70] sm:$0xff]
                  %324 = vst [vmem:[%s308 + $0x38] sm:$0xff] %v323
                $region98: #{tpu_custom_call.1} parent=92 // loop_footer
                  %s306 = sadd.s32 1, %s302
                $region99: #{tpu_custom_call.1} parent=92 // loop_footer_branch
                  %301 = sbr.rel target = $region95
                $region100: #{tpu_custom_call.1} parent=92 // loop_exit
                  _
              $region93: #{tpu_custom_call.1} parent=77 // pred_fallthru
                _
              // Predicated region
              $region101: #{tpu_custom_call.1} parent=77 // pred_check
                _
              $region102: #{tpu_custom_call.1} parent=77 // pred_check_branch
                %326 = sbr.rel target = $region104
              $region103: #{tpu_custom_call.1} parent=77 // pred_region
                _
              $region104: #{tpu_custom_call.1} parent=77 // pred_fallthru
                _
            $region78: #{tpu_custom_call.1} parent=73 // pred_fallthru
              _
            // Predicated region
            $region79: #{tpu_custom_call.1} parent=73 // pred_check
              _
            $region80: #{tpu_custom_call.1} parent=73 // pred_check_branch
              %272 = sbr.rel target = $region82
            $region81: #{tpu_custom_call.1} parent=73 // pred_region
              %s274 = ssub.s32 256, 1
              loop: start=0, step=1, limit=1
              $region83: #{tpu_custom_call.1} parent=81 // loop_pre_header
                _
              $region84: #{tpu_custom_call.1} parent=81 // loop_header
                %s276 = sphi 0, %s280
                %p277 = scmp.ge.s32.totalorder %s276, 1
                %s281 = sphi %s266, %s266
                %s282 = sphi %s261, %s261
              $region85: #{tpu_custom_call.1} parent=81 // loop_header_branch
                %279 = sbr.rel (%p277) target = $region89
              $region86: #{tpu_custom_call.1} parent=81 // loop_body
                %v283 = vld [vmem:[%s281] sm:%s274]
                %284 = vst [vmem:[%s282] sm:%s274] %v283
                %v285 = vld [vmem:[%s281 + $0x10] sm:%s274]
                %286 = vst [vmem:[%s282 + $0x8] sm:%s274] %v285
                %v287 = vld [vmem:[%s281 + $0x20] sm:%s274]
                %288 = vst [vmem:[%s282 + $0x10] sm:%s274] %v287
                %v289 = vld [vmem:[%s281 + $0x30] sm:%s274]
                %290 = vst [vmem:[%s282 + $0x18] sm:%s274] %v289
                %v291 = vld [vmem:[%s281 + $0x40] sm:%s274]
                %292 = vst [vmem:[%s282 + $0x20] sm:%s274] %v291
                %v293 = vld [vmem:[%s281 + $0x50] sm:%s274]
                %294 = vst [vmem:[%s282 + $0x28] sm:%s274] %v293
                %v295 = vld [vmem:[%s281 + $0x60] sm:%s274]
                %296 = vst [vmem:[%s282 + $0x30] sm:%s274] %v295
                %v297 = vld [vmem:[%s281 + $0x70] sm:%s274]
                %298 = vst [vmem:[%s282 + $0x38] sm:%s274] %v297
              $region87: #{tpu_custom_call.1} parent=81 // loop_footer
                %s280 = sadd.s32 1, %s276
              $region88: #{tpu_custom_call.1} parent=81 // loop_footer_branch
                %275 = sbr.rel target = $region84
              $region89: #{tpu_custom_call.1} parent=81 // loop_exit
                _
            $region82: #{tpu_custom_call.1} parent=73 // pred_fallthru
              _
          $region74: #{tpu_custom_call.1} parent=69 // pred_fallthru
            _
          %327 = vnop
        $region70: #{tpu_custom_call.1} parent=27 // pred_fallthru
          _
      $region28: #{tpu_custom_call.1} parent=5 // pred_fallthru
        _
      %p328 = scmp.le.s32.totalorder 1, %s14
      %p329 = scmp.lt.s32.totalorder %s14, 3
      %p330 = pnand %p328, %p329
      %p331 = pneg %p330
      // Predicated region
      $region105: #{tpu_custom_call.1} parent=5 // pred_check
        _
      $region106: #{tpu_custom_call.1} parent=5 // pred_check_branch
        %333 = sbr.rel (%p330) target = $region108
      $region107: #{tpu_custom_call.1} parent=5 // pred_region
        %s334 = ssub.s32 %s14, 1
        %s335 = sand.u32 %s27, 1
        %s336 = sand.u32 %s27, 1
        %s337 = smul.addr %s336, 64
        %s338 = scalar_lea.vmem [#allocation2], %s337
        // Predicated region
        $region109: #{tpu_custom_call.1} parent=107 // pred_check
          %p339 = pneg %p40
        $region110: #{tpu_custom_call.1} parent=107 // pred_check_branch
          %341 = sbr.rel (%p339) target = $region112
        $region111: #{tpu_custom_call.1} parent=107 // pred_region
          _
        $region112: #{tpu_custom_call.1} parent=107 // pred_fallthru
          _
        %s342 = sand.u32 %s53, 1
        %s343 = sand.u32 %s53, 1
        %s344 = smul.addr %s343, 64
        %s345 = scalar_lea.vmem [#allocation3], %s344
        // Predicated region
        $region113: #{tpu_custom_call.1} parent=107 // pred_check
          %p346 = pneg %p66
        $region114: #{tpu_custom_call.1} parent=107 // pred_check_branch
          %348 = sbr.rel (%p346) target = $region116
        $region115: #{tpu_custom_call.1} parent=107 // pred_region
          _
        $region116: #{tpu_custom_call.1} parent=107 // pred_fallthru
          _
        %s349 = sand.u32 %s27, 1
        %s350 = sand.u32 %s27, 1
        %s351 = smul.addr %s350, 64
        %s352 = scalar_lea.vmem [#allocation2], %s351
        %p353 = pneg %p40
        %p354 = pneg %p37
        %s355 = sand.u32 %s53, 1
        %s356 = sand.u32 %s53, 1
        %s357 = smul.addr %s356, 64
        %s358 = scalar_lea.vmem [#allocation3], %s357
        %p359 = pneg %p66
        %p360 = pneg %p63
        %p361 = pneg %p87
        %p362 = pneg %p84
        %p363 = pneg %p108
        %p364 = pneg %p105
        %p365 = pneg %p129
        %p366 = pneg %p126
        %p367 = pneg %p155
        %p368 = pneg %p152
        %s369 = sand.u32 %s142, 1
        %s370 = scalar_lea.sflag [#allocation5], %s369
        %s371 = sand.u32 %s142, 1
        %s372 = smul.addr %s371, 64
        %s373 = scalar_lea.vmem [#allocation4], %s372
        %s374 = smul.u32 8, %s19
        %s375 = smul.u32 8, %s19
        %s376 = smul.u32 8, %s19
        %v378 = vld [vmem:[%s338] sm:$0xff]
        %v379 = vld [vmem:[%s338 + $0x8] sm:$0xff]
        %v380 = vld [vmem:[%s338 + $0x10] sm:$0xff]
        %v381 = vld [vmem:[%s338 + $0x18] sm:$0xff]
        %v382 = vld [vmem:[%s338 + $0x20] sm:$0xff]
        %v383 = vld [vmem:[%s338 + $0x28] sm:$0xff]
        %v384 = vld [vmem:[%s338 + $0x30] sm:$0xff]
        %v385 = vld [vmem:[%s338 + $0x38] sm:$0xff]
        %v386 = vld [vmem:[%s345] sm:$0xff]
        %v387 = vld [vmem:[%s345 + $0x8] sm:$0xff]
        %v388 = vld [vmem:[%s345 + $0x10] sm:$0xff]
        %v389 = vld [vmem:[%s345 + $0x18] sm:$0xff]
        %v390 = vld [vmem:[%s345 + $0x20] sm:$0xff]
        %v391 = vld [vmem:[%s345 + $0x28] sm:$0xff]
        %v392 = vld [vmem:[%s345 + $0x30] sm:$0xff]
        %v393 = vld [vmem:[%s345 + $0x38] sm:$0xff]
        %vm394 = vcmask 64512
        %v395 = vsel %vm394, %v378, 0.0
        %396 = vadd.xlane.f32.xlu0 %v395
        %v397 = vpop.xlane.xlu0 %396
        %v398 = vsel %vm394, %v379, 0.0
        %399 = vadd.xlane.f32.xlu0 %v398
        %v400 = vpop.xlane.xlu0 %399
        %v401 = vsel %vm394, %v380, 0.0
        %402 = vadd.xlane.f32.xlu0 %v401
        %v403 = vpop.xlane.xlu0 %402
        %v404 = vsel %vm394, %v381, 0.0
        %405 = vadd.xlane.f32.xlu0 %v404
        %v406 = vpop.xlane.xlu0 %405
        %v407 = vsel %vm394, %v382, 0.0
        %408 = vadd.xlane.f32.xlu0 %v407
        %v409 = vpop.xlane.xlu0 %408
        %v410 = vsel %vm394, %v383, 0.0
        %411 = vadd.xlane.f32.xlu0 %v410
        %v412 = vpop.xlane.xlu0 %411
        %v413 = vsel %vm394, %v384, 0.0
        %414 = vadd.xlane.f32.xlu0 %v413
        %v415 = vpop.xlane.xlu0 %414
        %v416 = vsel %vm394, %v385, 0.0
        %417 = vadd.xlane.f32.xlu0 %v416
        %v418 = vpop.xlane.xlu0 %417
        %v419 = vsel %vm394, %v386, 0.0
        %420 = vadd.xlane.f32.xlu0 %v419
        %v421 = vpop.xlane.xlu0 %420
        %v422 = vsel %vm394, %v387, 0.0
        %423 = vadd.xlane.f32.xlu0 %v422
        %v424 = vpop.xlane.xlu0 %423
        %v425 = vsel %vm394, %v388, 0.0
        %426 = vadd.xlane.f32.xlu0 %v425
        %v427 = vpop.xlane.xlu0 %426
        %v428 = vsel %vm394, %v389, 0.0
        %429 = vadd.xlane.f32.xlu0 %v428
        %v430 = vpop.xlane.xlu0 %429
        %v431 = vsel %vm394, %v390, 0.0
        %432 = vadd.xlane.f32.xlu0 %v431
        %v433 = vpop.xlane.xlu0 %432
        %v434 = vsel %vm394, %v391, 0.0
        %435 = vadd.xlane.f32.xlu0 %v434
        %v436 = vpop.xlane.xlu0 %435
        %v437 = vsel %vm394, %v392, 0.0
        %438 = vadd.xlane.f32.xlu0 %v437
        %v439 = vpop.xlane.xlu0 %438
        %v440 = vsel %vm394, %v393, 0.0
        %441 = vadd.xlane.f32.xlu0 %v440
        %v442 = vpop.xlane.xlu0 %441
        %v443 = vadd.f32 %v397, %v421
        %v444 = vadd.f32 %v400, %v424
        %v445 = vadd.f32 %v403, %v427
        %v446 = vadd.f32 %v406, %v430
        %v447 = vadd.f32 %v409, %v433
        %v448 = vadd.f32 %v412, %v436
        %v449 = vadd.f32 %v415, %v439
        %v450 = vadd.f32 %v418, %v442
        %v451 = vmul.f32 %v443, 0.0625
        %v452 = vmul.f32 %v444, 0.0625
        %v453 = vmul.f32 %v445, 0.0625
        %v454 = vmul.f32 %v446, 0.0625
        %v455 = vmul.f32 %v447, 0.0625
        %v456 = vmul.f32 %v448, 0.0625
        %v457 = vmul.f32 %v449, 0.0625
        %v458 = vmul.f32 %v450, 0.0625
        %v459 = vsub.f32 %v378, %v451
        %v460 = vsub.f32 %v379, %v452
        %v461 = vsub.f32 %v380, %v453
        %v462 = vsub.f32 %v381, %v454
        %v463 = vsub.f32 %v382, %v455
        %v464 = vsub.f32 %v383, %v456
        %v465 = vsub.f32 %v384, %v457
        %v466 = vsub.f32 %v385, %v458
        %v467 = vsub.f32 %v386, %v451
        %v468 = vsub.f32 %v387, %v452
        %v469 = vsub.f32 %v388, %v453
        %v470 = vsub.f32 %v389, %v454
        %v471 = vsub.f32 %v390, %v455
        %v472 = vsub.f32 %v391, %v456
        %v473 = vsub.f32 %v392, %v457
        %v474 = vsub.f32 %v393, %v458
        %v475 = vmul.f32 %v459, %v459
        %v476 = vmul.f32 %v460, %v460
        %v477 = vmul.f32 %v461, %v461
        %v478 = vmul.f32 %v462, %v462
        %v479 = vmul.f32 %v463, %v463
        %v480 = vmul.f32 %v464, %v464
        %v481 = vmul.f32 %v465, %v465
        %v482 = vmul.f32 %v466, %v466
        %v483 = vsel %vm394, %v475, 0.0
        %484 = vadd.xlane.f32.xlu0 %v483
        %v485 = vpop.xlane.xlu0 %484
        %v486 = vsel %vm394, %v476, 0.0
        %487 = vadd.xlane.f32.xlu0 %v486
        %v488 = vpop.xlane.xlu0 %487
        %v489 = vsel %vm394, %v477, 0.0
        %490 = vadd.xlane.f32.xlu0 %v489
        %v491 = vpop.xlane.xlu0 %490
        %v492 = vsel %vm394, %v478, 0.0
        %493 = vadd.xlane.f32.xlu0 %v492
        %v494 = vpop.xlane.xlu0 %493
        %v495 = vsel %vm394, %v479, 0.0
        %496 = vadd.xlane.f32.xlu0 %v495
        %v497 = vpop.xlane.xlu0 %496
        %v498 = vsel %vm394, %v480, 0.0
        %499 = vadd.xlane.f32.xlu0 %v498
        %v500 = vpop.xlane.xlu0 %499
        %v501 = vsel %vm394, %v481, 0.0
        %502 = vadd.xlane.f32.xlu0 %v501
        %v503 = vpop.xlane.xlu0 %502
        %v504 = vsel %vm394, %v482, 0.0
        %505 = vadd.xlane.f32.xlu0 %v504
        %v506 = vpop.xlane.xlu0 %505
        %v507 = vmul.f32 %v467, %v467
        %v508 = vmul.f32 %v468, %v468
        %v509 = vmul.f32 %v469, %v469
        %v510 = vmul.f32 %v470, %v470
        %v511 = vmul.f32 %v471, %v471
        %v512 = vmul.f32 %v472, %v472
        %v513 = vmul.f32 %v473, %v473
        %v514 = vmul.f32 %v474, %v474
        %v515 = vsel %vm394, %v507, 0.0
        %516 = vadd.xlane.f32.xlu0 %v515
        %v517 = vpop.xlane.xlu0 %516
        %v518 = vsel %vm394, %v508, 0.0
        %519 = vadd.xlane.f32.xlu0 %v518
        %v520 = vpop.xlane.xlu0 %519
        %v521 = vsel %vm394, %v509, 0.0
        %522 = vadd.xlane.f32.xlu0 %v521
        %v523 = vpop.xlane.xlu0 %522
        %v524 = vsel %vm394, %v510, 0.0
        %525 = vadd.xlane.f32.xlu0 %v524
        %v526 = vpop.xlane.xlu0 %525
        %v527 = vsel %vm394, %v511, 0.0
        %528 = vadd.xlane.f32.xlu0 %v527
        %v529 = vpop.xlane.xlu0 %528
        %v530 = vsel %vm394, %v512, 0.0
        %531 = vadd.xlane.f32.xlu0 %v530
        %v532 = vpop.xlane.xlu0 %531
        %v533 = vsel %vm394, %v513, 0.0
        %534 = vadd.xlane.f32.xlu0 %v533
        %v535 = vpop.xlane.xlu0 %534
        %v536 = vsel %vm394, %v514, 0.0
        %537 = vadd.xlane.f32.xlu0 %v536
        %v538 = vpop.xlane.xlu0 %537
        %v539 = vadd.f32 %v485, %v517
        %v540 = vadd.f32 %v488, %v520
        %v541 = vadd.f32 %v491, %v523
        %v542 = vadd.f32 %v494, %v526
        %v543 = vadd.f32 %v497, %v529
        %v544 = vadd.f32 %v500, %v532
        %v545 = vadd.f32 %v503, %v535
        %v546 = vadd.f32 %v506, %v538
        %v547 = vmul.f32 %v539, 0.0625
        %v548 = vmul.f32 %v540, 0.0625
        %v549 = vmul.f32 %v541, 0.0625
        %v550 = vmul.f32 %v542, 0.0625
        %v551 = vmul.f32 %v543, 0.0625
        %v552 = vmul.f32 %v544, 0.0625
        %v553 = vmul.f32 %v545, 0.0625
        %v554 = vmul.f32 %v546, 0.0625
        %v555 = vadd.f32 %v547, 1e-05
        %v556 = vadd.f32 %v548, 1e-05
        %v557 = vadd.f32 %v549, 1e-05
        %v558 = vadd.f32 %v550, 1e-05
        %v559 = vadd.f32 %v551, 1e-05
        %v560 = vadd.f32 %v552, 1e-05
        %v561 = vadd.f32 %v553, 1e-05
        %v562 = vadd.f32 %v554, 1e-05
        %v563 = vrsqrt.pop %v555
        %v564 = vmul.f32 %v563, %v555
        %v565 = vmul.f32 %v564, %v563
        %v566 = vmul.f32 0.5, %v565
        %v567 = vsub.f32 1.5, %v566
        %v568 = vmul.f32 %v563, %v567
        %vm569 = vweird.f32 %v555
        %vm570 = vweird.f32 %v563
        %vm571 = vmor %vm569, %vm570
        %v572 = vsel %vm571, %v563, %v568
        %v573 = vrsqrt.pop %v556
        %v574 = vmul.f32 %v573, %v556
        %v575 = vmul.f32 %v574, %v573
        %v576 = vmul.f32 0.5, %v575
        %v577 = vsub.f32 1.5, %v576
        %v578 = vmul.f32 %v573, %v577
        %vm579 = vweird.f32 %v556
        %vm580 = vweird.f32 %v573
        %vm581 = vmor %vm579, %vm580
        %v582 = vsel %vm581, %v573, %v578
        %v583 = vrsqrt.pop %v557
        %v584 = vmul.f32 %v583, %v557
        %v585 = vmul.f32 %v584, %v583
        %v586 = vmul.f32 0.5, %v585
        %v587 = vsub.f32 1.5, %v586
        %v588 = vmul.f32 %v583, %v587
        %vm589 = vweird.f32 %v557
        %vm590 = vweird.f32 %v583
        %vm591 = vmor %vm589, %vm590
        %v592 = vsel %vm591, %v583, %v588
        %v593 = vrsqrt.pop %v558
        %v594 = vmul.f32 %v593, %v558
        %v595 = vmul.f32 %v594, %v593
        %v596 = vmul.f32 0.5, %v595
        %v597 = vsub.f32 1.5, %v596
        %v598 = vmul.f32 %v593, %v597
        %vm599 = vweird.f32 %v558
        %vm600 = vweird.f32 %v593
        %vm601 = vmor %vm599, %vm600
        %v602 = vsel %vm601, %v593, %v598
        %v603 = vrsqrt.pop %v559
        %v604 = vmul.f32 %v603, %v559
        %v605 = vmul.f32 %v604, %v603
        %v606 = vmul.f32 0.5, %v605
        %v607 = vsub.f32 1.5, %v606
        %v608 = vmul.f32 %v603, %v607
        %vm609 = vweird.f32 %v559
        %vm610 = vweird.f32 %v603
        %vm611 = vmor %vm609, %vm610
        %v612 = vsel %vm611, %v603, %v608
        %v613 = vrsqrt.pop %v560
        %v614 = vmul.f32 %v613, %v560
        %v615 = vmul.f32 %v614, %v613
        %v616 = vmul.f32 0.5, %v615
        %v617 = vsub.f32 1.5, %v616
        %v618 = vmul.f32 %v613, %v617
        %vm619 = vweird.f32 %v560
        %vm620 = vweird.f32 %v613
        %vm621 = vmor %vm619, %vm620
        %v622 = vsel %vm621, %v613, %v618
        %v623 = vrsqrt.pop %v561
        %v624 = vmul.f32 %v623, %v561
        %v625 = vmul.f32 %v624, %v623
        %v626 = vmul.f32 0.5, %v625
        %v627 = vsub.f32 1.5, %v626
        %v628 = vmul.f32 %v623, %v627
        %vm629 = vweird.f32 %v561
        %vm630 = vweird.f32 %v623
        %vm631 = vmor %vm629, %vm630
        %v632 = vsel %vm631, %v623, %v628
        %v633 = vrsqrt.pop %v562
        %v634 = vmul.f32 %v633, %v562
        %v635 = vmul.f32 %v634, %v633
        %v636 = vmul.f32 0.5, %v635
        %v637 = vsub.f32 1.5, %v636
        %v638 = vmul.f32 %v633, %v637
        %vm639 = vweird.f32 %v562
        %vm640 = vweird.f32 %v633
        %vm641 = vmor %vm639, %vm640
        %v642 = vsel %vm641, %v633, %v638
        %v643 = vpack.c.bf16 %v460, %v459
        %v644 = vpack.c.bf16 %v462, %v461
        %v645 = vpack.c.bf16 %v464, %v463
        %v646 = vpack.c.bf16 %v466, %v465
        %v647 = vld [vmem:[%s2] sm:$0xf]
        %v648 = vpack.c.bf16 %v468, %v467
        %v649 = vpack.c.bf16 %v470, %v469
        %v650 = vpack.c.bf16 %v472, %v471
        %v651 = vpack.c.bf16 %v474, %v473
        %v652 = vld [vmem:[%s3] sm:$0xf]
        %v654 = vsel %vm394, %v648, 0
        %v657 = vsel %vm394, %v649, 0
        %v660 = vsel %vm394, %v650, 0
        %v663 = vsel %vm394, %v651, 0
        %vm665 = vcmask 1043456
        %v667 = vsel %vm665, %v652, 0
        %669 = vmatpush.bf16.msra.mxu0 0
        %670 = vmatpush.bf16.msra.mxu0 0
        %671 = vmatpush.bf16.msra.mxu0 0
        %672 = vmatpush.bf16.msra.mxu0 0
        %673 = vmatpush.bf16.msra.mxu0 0
        %674 = vmatpush.bf16.msra.mxu0 0
        %675 = vmatpush.bf16.msra.mxu0 0
        %676 = vmatpush.bf16.msra.mxu0 %v667
        %677 = vmatmul.bf16.gmra.mxu0 %v654
        %v678 = vpop.f32.mrf.mxu0
        %v679 = vadd.f32 0.0, %v678
        %v680 = vpop.f32.mrf.mxu0
        %v681 = vadd.f32 0.0, %v680
        %682 = vmatmul.bf16.gmra.mxu0 %v657
        %v683 = vpop.f32.mrf.mxu0
        %v684 = vadd.f32 0.0, %v683
        %v685 = vpop.f32.mrf.mxu0
        %v686 = vadd.f32 0.0, %v685
        %687 = vmatmul.bf16.gmra.mxu0 %v660
        %v688 = vpop.f32.mrf.mxu0
        %v689 = vadd.f32 0.0, %v688
        %v690 = vpop.f32.mrf.mxu0
        %v691 = vadd.f32 0.0, %v690
        %692 = vmatmul.bf16.gmra.mxu0 %v663
        %v693 = vpop.f32.mrf.mxu0
        %v694 = vadd.f32 0.0, %v693
        %v695 = vpop.f32.mrf.mxu0
        %v696 = vadd.f32 0.0, %v695
        %697 = vdwg.mxu0
        %v699 = vsel %vm394, %v643, 0
        %v702 = vsel %vm394, %v644, 0
        %v705 = vsel %vm394, %v645, 0
        %v708 = vsel %vm394, %v646, 0
        %v711 = vsel %vm665, %v647, 0
        %713 = vmatpush.bf16.msra.mxu0 0
        %714 = vmatpush.bf16.msra.mxu0 0
        %715 = vmatpush.bf16.msra.mxu0 0
        %716 = vmatpush.bf16.msra.mxu0 0
        %717 = vmatpush.bf16.msra.mxu0 0
        %718 = vmatpush.bf16.msra.mxu0 0
        %719 = vmatpush.bf16.msra.mxu0 0
        %720 = vmatpush.bf16.msra.mxu0 %v711
        %721 = vmatmul.bf16.gmra.mxu0 %v699
        %v722 = vpop.f32.mrf.mxu0
        %v723 = vadd.f32 %v679, %v722
        %v724 = vpop.f32.mrf.mxu0
        %v725 = vadd.f32 %v681, %v724
        %726 = vmatmul.bf16.gmra.mxu0 %v702
        %v727 = vpop.f32.mrf.mxu0
        %v728 = vadd.f32 %v684, %v727
        %v729 = vpop.f32.mrf.mxu0
        %v730 = vadd.f32 %v686, %v729
        %731 = vmatmul.bf16.gmra.mxu0 %v705
        %v732 = vpop.f32.mrf.mxu0
        %v733 = vadd.f32 %v689, %v732
        %v734 = vpop.f32.mrf.mxu0
        %v735 = vadd.f32 %v691, %v734
        %736 = vmatmul.bf16.gmra.mxu0 %v708
        %v737 = vpop.f32.mrf.mxu0
        %v738 = vadd.f32 %v694, %v737
        %v739 = vpop.f32.mrf.mxu0
        %v740 = vadd.f32 %v696, %v739
        %741 = vdwg.mxu0
        %v742 = vmul.f32 %v723, %v572
        %v743 = vmul.f32 %v725, %v582
        %v744 = vmul.f32 %v728, %v592
        %v745 = vmul.f32 %v730, %v602
        %v746 = vmul.f32 %v733, %v612
        %v747 = vmul.f32 %v735, %v622
        %v748 = vmul.f32 %v738, %v632
        %v749 = vmul.f32 %v740, %v642
        %v750 = vld [vmem:[%s4] sm:$0x1]
        %v752 = vperm.slane %v750, 0
        %v754 = vadd.f32 %v742, %v752
        %v755 = vadd.f32 %v743, %v752
        %v756 = vadd.f32 %v744, %v752
        %v757 = vadd.f32 %v745, %v752
        %v758 = vadd.f32 %v746, %v752
        %v759 = vadd.f32 %v747, %v752
        %v760 = vadd.f32 %v748, %v752
        %v761 = vadd.f32 %v749, %v752
        %762 = vst [vmem:[%s373] sm:$0xff] %v754
        %763 = vst [vmem:[%s373 + $0x8] sm:$0xff] %v755
        %764 = vst [vmem:[%s373 + $0x10] sm:$0xff] %v756
        %765 = vst [vmem:[%s373 + $0x18] sm:$0xff] %v757
        %766 = vst [vmem:[%s373 + $0x20] sm:$0xff] %v758
        %767 = vst [vmem:[%s373 + $0x28] sm:$0xff] %v759
        %768 = vst [vmem:[%s373 + $0x30] sm:$0xff] %v760
        %769 = vst [vmem:[%s373 + $0x38] sm:$0xff] %v761
        %s770 = sand.u32 %s142, 1
        %s771 = scalar_lea.sflag [#allocation5], %s770
        %s772 = sand.u32 %s142, 1
        %s773 = smul.addr %s772, 64
        %s774 = scalar_lea.vmem [#allocation4], %s773
        // Predicated region
        $region117: #{tpu_custom_call.1} parent=107 // pred_check
          %p775 = pneg %p152
        $region118: #{tpu_custom_call.1} parent=107 // pred_check_branch
          %777 = sbr.rel (%p775) target = $region120
        $region119: #{tpu_custom_call.1} parent=107 // pred_region
          %s778 = smul.u32 8, %s19
          %780 = vsyncadd %s771, 0
          %s781 = smul.addr %s778, 8
          %s782 = scalar_lea.hbm %s5, %s781
          %s783 = sshll.u32 %s774, 4
          %s784 = int_to_ptr.vmem [resolvable:$true] %s783
          %s785 = sshll.u32 %s782, 4
          %s786 = int_to_ptr.hbm [resolvable:$true] %s785
          %791 = dma.vmem_to_hbm [thread:$0]  %s784, 1024, %s786, %s771, 128, 128, 8
        $region120: #{tpu_custom_call.1} parent=107 // pred_fallthru
          _
      $region108: #{tpu_custom_call.1} parent=5 // pred_fallthru
        _
      %p792 = scmp.le.s32.totalorder 2, %s14
      // Predicated region
      $region121: #{tpu_custom_call.1} parent=5 // pred_check
        %p793 = pneg %p792
      $region122: #{tpu_custom_call.1} parent=5 // pred_check_branch
        %795 = sbr.rel (%p793) target = $region124
      $region123: #{tpu_custom_call.1} parent=5 // pred_region
        %s796 = ssub.s32 %s14, 2
        // Predicated region
        $region125: #{tpu_custom_call.1} parent=123 // pred_check
          %p797 = pneg %p158
        $region126: #{tpu_custom_call.1} parent=123 // pred_check_branch
          %799 = sbr.rel (%p797) target = $region128
        $region127: #{tpu_custom_call.1} parent=123 // pred_region
          %s800 = sand.u32 %s143, 1
          %s801 = scalar_lea.sflag [#allocation5], %s800
          %s802 = sand.u32 %s143, 1
          %s803 = smul.addr %s802, 64
          %s804 = scalar_lea.vmem [#allocation4], %s803
          %806 = dma.done %s801, 1024
        $region128: #{tpu_custom_call.1} parent=123 // pred_fallthru
          _
      $region124: #{tpu_custom_call.1} parent=5 // pred_fallthru
        _
    $region6: #{tpu_custom_call.1} parent=1 // loop_footer
      %s18 = sadd.s32 1, %s14
    $region7: #{tpu_custom_call.1} parent=1 // loop_footer_branch
      %13 = sbr.rel target = $region3
    $region8: #{tpu_custom_call.1} parent=1 // loop_exit
      _
    %807 = vsyncpa [#allocation5], 1
    %s808 = scalar_lea.sflag [#allocation5], 1
    %809 = vsyncpa %s808, 1

</llo_original>
